<compile_context>
chip_gen: v7x
topology: tpu7x:2x2x1
jax: 0.10.0
libtpu: 0.0.40
codegen_flags: <defaults>
</compile_context>

<pallas_src>
import functools

import jax
import jax.numpy as jnp
from jax.experimental import pallas as pl
from jax.experimental.pallas import tpu as pltpu


def _graphsage_fused_kernel(a_ref, x_ref, w1_ref, b1_ref, w2_ref, b2_ref, o_ref,
                            *, hidden, out_channels):
    """Fused GraphSAGE forward: conv1 + ReLU + conv2 + log_softmax, one kernel.

    a_ref : (N, N)        bf16  row-normalized adjacency
    x_ref : (N, F_in)     bf16  node features
    w1_ref: (F_in, 2*H)   bf16  [W_l1 | W_r1]
    b1_ref: (1, H)        f32
    w2_ref: (H, 2*C)      bf16  [W_l2 | W_r2]
    b2_ref: (1, C)        f32
    o_ref : (N, C)        f32   log_softmax output
    """
    a = a_ref[...]
    x = x_ref[...]

    # ---- layer 1: h = A @ (x @ W_l1) + x @ W_r1 + b1 ; ReLU -------------------
    xw = jnp.dot(x, w1_ref[...], preferred_element_type=jnp.float32)   # (N, 2H)
    xw_l = xw[:, :hidden]
    xw_r = xw[:, hidden:]
    agg1 = jnp.dot(a, xw_l.astype(jnp.bfloat16),
                   preferred_element_type=jnp.float32)                 # (N, H)
    h = jnp.maximum(agg1 + xw_r + b1_ref[...], 0.0)                    # (N, H) f32

    # ---- layer 2: z = A @ (h @ W_l2) + h @ W_r2 + b2 --------------------------
    hw = jnp.dot(h.astype(jnp.bfloat16), w2_ref[...],
                 preferred_element_type=jnp.float32)                   # (N, 2C)
    hw_l = hw[:, :out_channels]
    hw_r = hw[:, out_channels:]
    agg2 = jnp.dot(a, hw_l.astype(jnp.bfloat16),
                   preferred_element_type=jnp.float32)                 # (N, C)
    z = agg2 + hw_r + b2_ref[...]

    # ---- log_softmax(z, axis=-1) ----------------------------------------------
    m = jnp.max(z, axis=-1, keepdims=True)
    lse = jnp.log(jnp.sum(jnp.exp(z - m), axis=-1, keepdims=True)) + m
    o_ref[...] = (z - lse).astype(o_ref.dtype)


def graphsage_forward(x, a_norm, params):
    """GraphSAGE.forward: relu(conv1(x, A)) -> conv2 -> log_softmax(dim=-1).

    Single fused pallas_call; hidden activations stay on-chip.
    """
    n, _ = x.shape
    hidden = params["w_l1"].shape[1]
    out_c = params["w_l2"].shape[1]

    # Pack [W_l | W_r] per layer into one projection slab; cast matmul operands to bf16.
    w1 = jnp.concatenate([params["w_l1"], params["w_r1"]], axis=1).astype(jnp.bfloat16)
    w2 = jnp.concatenate([params["w_l2"], params["w_r2"]], axis=1).astype(jnp.bfloat16)

    kernel = functools.partial(_graphsage_fused_kernel,
                               hidden=hidden, out_channels=out_c)
    # No grid, no BlockSpecs: whole arrays live in VMEM for a single invocation.
    # vmem_limit_bytes raised (v5e default scoped limit is only 16 MiB); 64 MiB is
    # within every generation's physical VMEM.
    return pl.pallas_call(
        kernel,
        out_shape=jax.ShapeDtypeStruct((n, out_c), jnp.float32),
        compiler_params=pltpu.CompilerParams(vmem_limit_bytes=64 << 20),
    )(a_norm.astype(jnp.bfloat16), x.astype(jnp.bfloat16),
      w1, params["b1"], w2, params["b2"])


def graphsage_reference(x, a_norm, params):
    """Pure-JAX f32 reference of the same forward (for a correctness check)."""
    agg1 = a_norm @ x
    h = jnp.maximum(agg1 @ params["w_l1"] + x @ params["w_r1"] + params["b1"], 0.0)
    agg2 = a_norm @ h
    z = agg2 @ params["w_l2"] + h @ params["w_r2"] + params["b2"]
    return jax.nn.log_softmax(z, axis=-1)


def init_params(key, in_channels, hidden_channels, out_channels):
    """Deterministic synthetic parameters (shapes per PyG SAGEConv:
    lin_l: (F_in -> F_out) with bias, lin_r: (F_in -> F_out) no bias)."""
    k1, k2, k3, k4 = jax.random.split(key, 4)
    scale1 = 1.0 / jnp.sqrt(jnp.float32(in_channels))
    scale2 = 1.0 / jnp.sqrt(jnp.float32(hidden_channels))
    return {
        "w_l1": jax.random.uniform(k1, (in_channels, hidden_channels), jnp.float32,
                                   -scale1, scale1),
        "w_r1": jax.random.uniform(k2, (in_channels, hidden_channels), jnp.float32,
                                   -scale1, scale1),
        "b1": jnp.zeros((1, hidden_channels), jnp.float32),
        "w_l2": jax.random.uniform(k3, (hidden_channels, out_channels), jnp.float32,
                                   -scale2, scale2),
        "w_r2": jax.random.uniform(k4, (hidden_channels, out_channels), jnp.float32,
                                   -scale2, scale2),
        "b2": jnp.zeros((1, out_channels), jnp.float32),
    }


if __name__ == "__main__":
    N = 128             # number of graph nodes
    in_channels = 16
    hidden_channels = 8
    out_channels = 4

    key = jax.random.PRNGKey(0)
    kx, ka, kp = jax.random.split(key, 3)

    # node features
    x_raw = jax.random.normal(kx, (N, in_channels), jnp.float32)
    # preprocessing from the script: x = (x - x.mean(0)) / x.std(0)  (unbiased std, ddof=1)
    x = (x_raw - x_raw.mean(axis=0)) / x_raw.std(axis=0, ddof=1)

    # random symmetric adjacency (no self loops), row-normalized for mean aggregation
    adj = (jax.random.uniform(ka, (N, N)) < 0.1).astype(jnp.float32)
    adj = jnp.maximum(adj, adj.T)
    adj = adj * (1.0 - jnp.eye(N, dtype=jnp.float32))
    deg = jnp.maximum(adj.sum(axis=1, keepdims=True), 1.0)
    a_norm = adj / deg

    params = init_params(kp, in_channels, hidden_channels, out_channels)

    out = graphsage_forward(x, a_norm, params)
    jax.block_until_ready(out)

    # sanity: rows of log_softmax output must (log-)sum to ~0 (self-consistent
    # regardless of bf16 operand rounding)
    row_logsumexp = jax.scipy.special.logsumexp(out, axis=-1)
    assert out.shape == (N, out_channels)
    assert bool(jnp.all(jnp.isfinite(out)))
    assert bool(jnp.all(jnp.abs(row_logsumexp) < 1e-4))

    # correctness vs. pure-JAX f32 reference (loose tolerance: bf16 matmul operands)
    ref = graphsage_reference(x, a_norm, params)
    assert bool(jnp.max(jnp.abs(out - ref)) < 0.1)

    print("KERNEL_OK")
</pallas_src>

<mosaic_0001>
module attributes {stable_mosaic.version = 11 : i64} {
  func.func @_graphsage_fused_kernel(%arg0: memref<128x128xbf16, #tpu.memory_space<vmem>>, %arg1: memref<128x16xbf16, #tpu.memory_space<vmem>>, %arg2: memref<16x16xbf16, #tpu.memory_space<vmem>>, %arg3: memref<1x8xf32, #tpu.memory_space<vmem>>, %arg4: memref<8x8xbf16, #tpu.memory_space<vmem>>, %arg5: memref<1x4xf32, #tpu.memory_space<vmem>>, %arg6: memref<128x4xf32, #tpu.memory_space<vmem>>) attributes {dimension_semantics = [], scalar_prefetch = 0 : i64, scratch_operands = 0 : i64, tpu.core_type = #tpu.core_type<tc>} {
    %c0 = arith.constant 0 : index
    %c0_0 = arith.constant 0 : index
    %0 = vector.load %arg0[%c0, %c0_0] : memref<128x128xbf16, #tpu.memory_space<vmem>>, vector<128x128xbf16>
    %c0_1 = arith.constant 0 : index
    %c0_2 = arith.constant 0 : index
    %1 = vector.load %arg1[%c0_1, %c0_2] : memref<128x16xbf16, #tpu.memory_space<vmem>>, vector<128x16xbf16>
    %c0_3 = arith.constant 0 : index
    %c0_4 = arith.constant 0 : index
    %2 = vector.load %arg2[%c0_3, %c0_4] : memref<16x16xbf16, #tpu.memory_space<vmem>>, vector<16x16xbf16>
    %cst = arith.constant dense<0.000000e+00> : vector<128x16xf32>
    %3 = tpu.matmul %1, %2, %cst {dimension_numbers = #tpu.dot_dimension_numbers<[1], [0], [0], [1], [0, 0, 1, 1], [], []>} : vector<128x16xbf16>, vector<16x16xbf16>, vector<128x16xf32> -> vector<128x16xf32>
    %4 = vector.extract_strided_slice %3 {offsets = [0, 0], sizes = [128, 8], strides = [1, 1]} : vector<128x16xf32> to vector<128x8xf32>
    %5 = vector.extract_strided_slice %3 {offsets = [0, 8], sizes = [128, 8], strides = [1, 1]} : vector<128x16xf32> to vector<128x8xf32>
    %6 = arith.truncf %4 : vector<128x8xf32> to vector<128x8xbf16>
    %cst_5 = arith.constant dense<0.000000e+00> : vector<128x8xf32>
    %7 = tpu.matmul %0, %6, %cst_5 {dimension_numbers = #tpu.dot_dimension_numbers<[1], [0], [0], [1], [0, 0, 1, 1], [], []>} : vector<128x128xbf16>, vector<128x8xbf16>, vector<128x8xf32> -> vector<128x8xf32>
    %8 = arith.addf %7, %5 : vector<128x8xf32>
    %c0_6 = arith.constant 0 : index
    %c0_7 = arith.constant 0 : index
    %9 = vector.load %arg3[%c0_6, %c0_7] : memref<1x8xf32, #tpu.memory_space<vmem>>, vector<1x8xf32>
    %10 = vector.broadcast %9 : vector<1x8xf32> to vector<128x8xf32>
    %11 = arith.addf %8, %10 : vector<128x8xf32>
    %cst_8 = arith.constant 0.000000e+00 : f32
    %12 = vector.broadcast %cst_8 : f32 to vector<128x8xf32>
    %13 = arith.maximumf %11, %12 : vector<128x8xf32>
    %14 = arith.truncf %13 : vector<128x8xf32> to vector<128x8xbf16>
    %c0_9 = arith.constant 0 : index
    %c0_10 = arith.constant 0 : index
    %15 = vector.load %arg4[%c0_9, %c0_10] : memref<8x8xbf16, #tpu.memory_space<vmem>>, vector<8x8xbf16>
    %cst_11 = arith.constant dense<0.000000e+00> : vector<128x8xf32>
    %16 = tpu.matmul %14, %15, %cst_11 {dimension_numbers = #tpu.dot_dimension_numbers<[1], [0], [0], [1], [0, 0, 1, 1], [], []>} : vector<128x8xbf16>, vector<8x8xbf16>, vector<128x8xf32> -> vector<128x8xf32>
    %17 = vector.extract_strided_slice %16 {offsets = [0, 0], sizes = [128, 4], strides = [1, 1]} : vector<128x8xf32> to vector<128x4xf32>
    %18 = vector.extract_strided_slice %16 {offsets = [0, 4], sizes = [128, 4], strides = [1, 1]} : vector<128x8xf32> to vector<128x4xf32>
    %19 = arith.truncf %17 : vector<128x4xf32> to vector<128x4xbf16>
    %cst_12 = arith.constant dense<0.000000e+00> : vector<128x4xf32>
    %20 = tpu.matmul %0, %19, %cst_12 {dimension_numbers = #tpu.dot_dimension_numbers<[1], [0], [0], [1], [0, 0, 1, 1], [], []>} : vector<128x128xbf16>, vector<128x4xbf16>, vector<128x4xf32> -> vector<128x4xf32>
    %21 = arith.addf %20, %18 : vector<128x4xf32>
    %c0_13 = arith.constant 0 : index
    %c0_14 = arith.constant 0 : index
    %22 = vector.load %arg5[%c0_13, %c0_14] : memref<1x4xf32, #tpu.memory_space<vmem>>, vector<1x4xf32>
    %23 = vector.broadcast %22 : vector<1x4xf32> to vector<128x4xf32>
    %24 = arith.addf %21, %23 : vector<128x4xf32>
    %cst_15 = arith.constant dense<0xFF800000> : vector<128xf32>
    %25 = vector.multi_reduction <maximumf>, %24, %cst_15 [1] : vector<128x4xf32> to vector<128xf32>
    %26 = vector.shape_cast %25 : vector<128xf32> to vector<128x1xf32>
    %27 = vector.broadcast %26 : vector<128x1xf32> to vector<128x4xf32>
    %28 = arith.subf %24, %27 : vector<128x4xf32>
    %29 = math.exp %28 : vector<128x4xf32>
    %cst_16 = arith.constant dense<0.000000e+00> : vector<128xf32>
    %30 = vector.multi_reduction <add>, %29, %cst_16 [1] : vector<128x4xf32> to vector<128xf32>
    %31 = vector.shape_cast %30 : vector<128xf32> to vector<128x1xf32>
    %32 = math.log %31 : vector<128x1xf32>
    %33 = arith.addf %32, %26 : vector<128x1xf32>
    %34 = vector.broadcast %33 : vector<128x1xf32> to vector<128x4xf32>
    %35 = arith.subf %24, %34 : vector<128x4xf32>
    %c0_17 = arith.constant 0 : index
    %c0_18 = arith.constant 0 : index
    %36 = vector.load %arg6[%c0_17, %c0_18] : memref<128x4xf32, #tpu.memory_space<vmem>>, vector<128x4xf32>
    tpu.vector_store %arg6[%c0_17, %c0_18], %35 {strides = array<i32>} : memref<128x4xf32, #tpu.memory_space<vmem>>, vector<128x4xf32>,
    return
  }
}

</mosaic_0001>

<llo_original>
// kernel: tpu_custom_call.1
$region0: #{tpu_custom_call.1}
  #allocation0 [shape = 'u32[]', space=smem, size = 0x4, offset = 0x4, fixed_abs, tag = 'smem constant byte address 0x4 - core index']
  #allocation1 [shape = 'u32[144,128]{1,0:T(1,128)}', space=vmem, size = 0x12000, scoped, tag = 'internal scratch']
  %s0 = inlined_call_operand.hbm [shape: bf16[128,128], index: 0, kind: input, shape index: {}]
  %s1 = inlined_call_operand.hbm [shape: bf16[128,16], index: 1, kind: input, shape index: {}]
  %s2 = inlined_call_operand.hbm [shape: bf16[16,16], index: 2, kind: input, shape index: {}]
  %s3 = inlined_call_operand.hbm [shape: f32[1,8], index: 3, kind: input, shape index: {}]
  %s4 = inlined_call_operand.hbm [shape: bf16[8,8], index: 4, kind: input, shape index: {}]
  %s5 = inlined_call_operand.hbm [shape: f32[1,4], index: 5, kind: input, shape index: {}]
  %s6 = inlined_call_operand.hbm [shape: f32[128,4], index: 6, kind: output, shape index: {}]
  %s7 = sld [smem:[#allocation0]]
  $region58: #{tpu_custom_call.1} parent=0
    _
  %s9 = ssub.s32 1, %s7
  %s10 = scalar_select 0, %s9, %s7
  $region1: #{tpu_custom_call.1} parent=0
    #allocation2 [shape = 'u8[32768]{0}', space=vmem, size = 0x8000, scoped, tag = 'input window, operand 0, single buffered']
    #allocation3 [shape = 's32[1]{0}', space=sflag, size = 0x4, scoped, tag = 'scoped memory for tpu_custom_call.1']
    #allocation4 [shape = 's32[1]{0}', space=sflag, size = 0x4, scoped, tag = 'scoped memory for tpu_custom_call.1']
    #allocation5 [shape = 'u8[32768]{0}', space=vmem, size = 0x8000, scoped, tag = 'input window, operand 1, single buffered']
    #allocation6 [shape = 's32[1]{0}', space=sflag, size = 0x4, scoped, tag = 'scoped memory for tpu_custom_call.1']
    #allocation7 [shape = 'u8[4096]{0}', space=vmem, size = 0x1000, scoped, tag = 'input window, operand 2, single buffered']
    #allocation8 [shape = 'u8[512]{0}', space=vmem, size = 0x400, scoped, tag = 'input window, operand 3, single buffered']
    #allocation9 [shape = 's32[1]{0}', space=sflag, size = 0x4, scoped, tag = 'scoped memory for tpu_custom_call.1']
    #allocation10 [shape = 'u8[2048]{0}', space=vmem, size = 0x800, scoped, tag = 'input window, operand 4, single buffered']
    #allocation11 [shape = 'u8[512]{0}', space=vmem, size = 0x400, scoped, tag = 'input window, operand 5, single buffered']
    #allocation12 [shape = 's32[1]{0}', space=sflag, size = 0x4, scoped, tag = 'scoped memory for tpu_custom_call.1']
    #allocation13 [shape = 'u8[65536]{0}', space=vmem, size = 0x10000, scoped, tag = 'output window, operand 0, single buffered']
    %11 = vsyncpa [#allocation3], 0
    %12 = vsyncpa [#allocation6], 0
    %13 = vsyncpa [#allocation9], 0
    %14 = vsyncpa [#allocation12], 0
    %15 = vsyncpa [#allocation4], 0
    // Predicated region
    $region2: #{tpu_custom_call.1} parent=1 // pred_check
      _
    $region3: #{tpu_custom_call.1} parent=1 // pred_check_branch
      %17 = sbr.rel (0) target = $region5
    $region4: #{tpu_custom_call.1} parent=1 // pred_region
      %s19 = ssub.s32 1024, 1024
      %20 = vsyncadd [#allocation3], %s19
      %s21 = sshll.u32 [#allocation2], 4
      %s22 = int_to_ptr.vmem [resolvable:$true] %s21
      %27 = dma.hbm_to_vmem [thread:$0]  %s0, 1024, %s22, [#allocation3], 64, 64, 4
    $region5: #{tpu_custom_call.1} parent=1 // pred_fallthru
      _
    // Predicated region
    $region6: #{tpu_custom_call.1} parent=1 // pred_check
      _
    $region7: #{tpu_custom_call.1} parent=1 // pred_check_branch
      %29 = sbr.rel (0) target = $region9
    $region8: #{tpu_custom_call.1} parent=1 // pred_region
      %s31 = ssub.s32 1024, 1024
      %32 = vsyncadd [#allocation6], %s31
      %s33 = sshll.u32 [#allocation5], 4
      %s34 = int_to_ptr.vmem [resolvable:$true] %s33
      %39 = dma.hbm_to_vmem [thread:$0]  %s1, 1024, %s34, [#allocation6], 64, 64, 4
    $region9: #{tpu_custom_call.1} parent=1 // pred_fallthru
      _
    // Predicated region
    $region10: #{tpu_custom_call.1} parent=1 // pred_check
      _
    $region11: #{tpu_custom_call.1} parent=1 // pred_check_branch
      %41 = sbr.rel (0) target = $region13
    $region12: #{tpu_custom_call.1} parent=1 // pred_region
      %s43 = ssub.s32 128, 128
      %44 = vsyncadd [#allocation6], %s43
      %s45 = sshll.u32 [#allocation7], 4
      %s46 = int_to_ptr.vmem [resolvable:$true] %s45
      %51 = dma.hbm_to_vmem [thread:$0]  %s2, 128, %s46, [#allocation6], 64, 64, 4
    $region13: #{tpu_custom_call.1} parent=1 // pred_fallthru
      _
    // Predicated region
    $region14: #{tpu_custom_call.1} parent=1 // pred_check
      _
    $region15: #{tpu_custom_call.1} parent=1 // pred_check_branch
      %53 = sbr.rel (0) target = $region17
    $region16: #{tpu_custom_call.1} parent=1 // pred_region
      %s55 = ssub.s32 16, 16
      %56 = vsyncadd [#allocation9], %s55
      %s58 = sshll.u32 [#allocation8], 4
      %s59 = int_to_ptr.vmem [resolvable:$true] %s58
      %61 = dma.hbm_to_vmem [thread:$0]  %s3, 16, %s59, [#allocation9]
    $region17: #{tpu_custom_call.1} parent=1 // pred_fallthru
      _
    // Predicated region
    $region18: #{tpu_custom_call.1} parent=1 // pred_check
      _
    $region19: #{tpu_custom_call.1} parent=1 // pred_check_branch
      %63 = sbr.rel (0) target = $region21
    $region20: #{tpu_custom_call.1} parent=1 // pred_region
      %s65 = ssub.s32 64, 64
      %66 = vsyncadd [#allocation9], %s65
      %s68 = sshll.u32 [#allocation10], 4
      %s69 = int_to_ptr.vmem [resolvable:$true] %s68
      %71 = dma.hbm_to_vmem [thread:$0]  %s4, 64, %s69, [#allocation9]
    $region21: #{tpu_custom_call.1} parent=1 // pred_fallthru
      _
    // Predicated region
    $region22: #{tpu_custom_call.1} parent=1 // pred_check
      _
    $region23: #{tpu_custom_call.1} parent=1 // pred_check_branch
      %73 = sbr.rel (0) target = $region25
    $region24: #{tpu_custom_call.1} parent=1 // pred_region
      %s75 = ssub.s32 16, 16
      %76 = vsyncadd [#allocation12], %s75
      %s78 = sshll.u32 [#allocation11], 4
      %s79 = int_to_ptr.vmem [resolvable:$true] %s78
      %81 = dma.hbm_to_vmem [thread:$0]  %s5, 16, %s79, [#allocation12]
    $region25: #{tpu_custom_call.1} parent=1 // pred_fallthru
      _
    // Predicated region
    $region26: #{tpu_custom_call.1} parent=1 // pred_check
      _
    $region27: #{tpu_custom_call.1} parent=1 // pred_check_branch
      %83 = sbr.rel (0) target = $region29
    $region28: #{tpu_custom_call.1} parent=1 // pred_region
      %84 = dma.done [#allocation3], 1024
    $region29: #{tpu_custom_call.1} parent=1 // pred_fallthru
      _
    // Predicated region
    $region30: #{tpu_custom_call.1} parent=1 // pred_check
      _
    $region31: #{tpu_custom_call.1} parent=1 // pred_check_branch
      %86 = sbr.rel (0) target = $region33
    $region32: #{tpu_custom_call.1} parent=1 // pred_region
      %87 = dma.done [#allocation6], 1024
    $region33: #{tpu_custom_call.1} parent=1 // pred_fallthru
      _
    // Predicated region
    $region34: #{tpu_custom_call.1} parent=1 // pred_check
      _
    $region35: #{tpu_custom_call.1} parent=1 // pred_check_branch
      %89 = sbr.rel (0) target = $region37
    $region36: #{tpu_custom_call.1} parent=1 // pred_region
      %90 = dma.done [#allocation6], 128
    $region37: #{tpu_custom_call.1} parent=1 // pred_fallthru
      _
    // Predicated region
    $region38: #{tpu_custom_call.1} parent=1 // pred_check
      _
    $region39: #{tpu_custom_call.1} parent=1 // pred_check_branch
      %92 = sbr.rel (0) target = $region41
    $region40: #{tpu_custom_call.1} parent=1 // pred_region
      %93 = dma.done [#allocation9], 16
    $region41: #{tpu_custom_call.1} parent=1 // pred_fallthru
      _
    // Predicated region
    $region42: #{tpu_custom_call.1} parent=1 // pred_check
      _
    $region43: #{tpu_custom_call.1} parent=1 // pred_check_branch
      %95 = sbr.rel (0) target = $region45
    $region44: #{tpu_custom_call.1} parent=1 // pred_region
      %96 = dma.done [#allocation9], 64
    $region45: #{tpu_custom_call.1} parent=1 // pred_fallthru
      _
    // Predicated region
    $region46: #{tpu_custom_call.1} parent=1 // pred_check
      _
    $region47: #{tpu_custom_call.1} parent=1 // pred_check_branch
      %98 = sbr.rel (0) target = $region49
    $region48: #{tpu_custom_call.1} parent=1 // pred_region
      %99 = dma.done [#allocation12], 16
    $region49: #{tpu_custom_call.1} parent=1 // pred_fallthru
      _
    %v101 = vld [vmem:[#allocation2] sm:$0xf]
    %v102 = vld [vmem:[#allocation2 + $0x4] sm:$0xf]
    %v103 = vld [vmem:[#allocation2 + $0x8] sm:$0xf]
    %v104 = vld [vmem:[#allocation2 + $0xc] sm:$0xf]
    %v105 = vld [vmem:[#allocation2 + $0x10] sm:$0xf]
    %v106 = vld [vmem:[#allocation2 + $0x14] sm:$0xf]
    %v107 = vld [vmem:[#allocation2 + $0x18] sm:$0xf]
    %v108 = vld [vmem:[#allocation2 + $0x1c] sm:$0xf]
    %v109 = vld [vmem:[#allocation2 + $0x20] sm:$0xf]
    %v110 = vld [vmem:[#allocation2 + $0x24] sm:$0xf]
    %v111 = vld [vmem:[#allocation2 + $0x28] sm:$0xf]
    %v112 = vld [vmem:[#allocation2 + $0x2c] sm:$0xf]
    %v113 = vld [vmem:[#allocation2 + $0x30] sm:$0xf]
    %v114 = vld [vmem:[#allocation2 + $0x34] sm:$0xf]
    %v115 = vld [vmem:[#allocation2 + $0x38] sm:$0xf]
    %v116 = vld [vmem:[#allocation2 + $0x3c] sm:$0xf]
    %v117 = vld [vmem:[#allocation5] sm:$0xf]
    %v118 = vld [vmem:[#allocation5 + $0x4] sm:$0xf]
    %v119 = vld [vmem:[#allocation5 + $0x8] sm:$0xf]
    %v120 = vld [vmem:[#allocation5 + $0xc] sm:$0xf]
    %v121 = vld [vmem:[#allocation5 + $0x10] sm:$0xf]
    %v122 = vld [vmem:[#allocation5 + $0x14] sm:$0xf]
    %v123 = vld [vmem:[#allocation5 + $0x18] sm:$0xf]
    %v124 = vld [vmem:[#allocation5 + $0x1c] sm:$0xf]
    %v125 = vld [vmem:[#allocation5 + $0x20] sm:$0xf]
    %v126 = vld [vmem:[#allocation5 + $0x24] sm:$0xf]
    %v127 = vld [vmem:[#allocation5 + $0x28] sm:$0xf]
    %v128 = vld [vmem:[#allocation5 + $0x2c] sm:$0xf]
    %v129 = vld [vmem:[#allocation5 + $0x30] sm:$0xf]
    %v130 = vld [vmem:[#allocation5 + $0x34] sm:$0xf]
    %v131 = vld [vmem:[#allocation5 + $0x38] sm:$0xf]
    %v132 = vld [vmem:[#allocation5 + $0x3c] sm:$0xf]
    %v133 = vld [vmem:[#allocation7] sm:$0xf]
    %v134 = vld [vmem:[#allocation7 + $0x4] sm:$0xf]
    %v151 = vunpack.c.l.b16 %v117
    %v152 = vunpack.c.l.b16 %v118
    %v153 = vunpack.c.l.b16 %v119
    %v154 = vunpack.c.l.b16 %v120
    %v155 = vunpack.c.l.b16 %v121
    %v156 = vunpack.c.l.b16 %v122
    %v157 = vunpack.c.l.b16 %v123
    %v158 = vunpack.c.l.b16 %v124
    %v159 = vunpack.c.l.b16 %v125
    %v160 = vunpack.c.l.b16 %v126
    %v161 = vunpack.c.l.b16 %v127
    %v162 = vunpack.c.l.b16 %v128
    %v163 = vunpack.c.l.b16 %v129
    %v164 = vunpack.c.l.b16 %v130
    %v165 = vunpack.c.l.b16 %v131
    %v166 = vunpack.c.l.b16 %v132
    %v167 = vpack.c.b16 %v152, %v151
    %v168 = vpack.c.b16 %v154, %v153
    %v169 = vpack.c.b16 %v156, %v155
    %v170 = vpack.c.b16 %v158, %v157
    %v171 = vpack.c.b16 %v160, %v159
    %v172 = vpack.c.b16 %v162, %v161
    %v173 = vpack.c.b16 %v164, %v163
    %v174 = vpack.c.b16 %v166, %v165
    %v177 = vunpack.c.l.b16 %v133
    %v178 = vunpack.c.l.b16 %v134
    %v179 = vpack.c.b16 %v178, %v177
    %vm181 = vcmask 130048
    %v183 = vsel %vm181, %v167, 0
    %v186 = vsel %vm181, %v168, 0
    %v189 = vsel %vm181, %v169, 0
    %v192 = vsel %vm181, %v170, 0
    %v195 = vsel %vm181, %v171, 0
    %v198 = vsel %vm181, %v172, 0
    %v201 = vsel %vm181, %v173, 0
    %v204 = vsel %vm181, %v174, 0
    %206 = vmatprep.subr.bf16.mxu0 0
    %207 = vmatpush1.bf16.msra.mxu0 %v179
    %208 = vmatprep.subr.bf16.mxu0 0
    %209 = vmatpush1.bf16.msra.mxu0 0
    %210 = vmatprep.subr.bf16.mxu0 0
    %211 = vmatpush1.bf16.msra.mxu0 0
    %212 = vmatprep.subr.bf16.mxu0 0
    %213 = vmatpush1.bf16.msra.mxu0 0
    %214 = vmatprep.subr.bf16.mxu0 0
    %215 = vmatpush1.bf16.msra.mxu0 0
    %216 = vmatprep.subr.bf16.mxu0 0
    %217 = vmatpush1.bf16.msra.mxu0 0
    %218 = vmatprep.subr.bf16.mxu0 0
    %219 = vmatpush1.bf16.msra.mxu0 0
    %220 = vmatprep.subr.bf16.mxu0 0
    %221 = vmatpush1.bf16.msra.mxu0 0
    %222 = vmatprep.subr.bf16.mxu0 0
    %223 = vmatpush1.bf16.msra.mxu0 0
    %224 = vmatprep.subr.bf16.mxu0 0
    %225 = vmatpush1.bf16.msra.mxu0 0
    %226 = vmatprep.subr.bf16.mxu0 0
    %227 = vmatpush1.bf16.msra.mxu0 0
    %228 = vmatprep.subr.bf16.mxu0 0
    %229 = vmatpush1.bf16.msra.mxu0 0
    %230 = vmatprep.subr.bf16.mxu0 0
    %231 = vmatpush1.bf16.msra.mxu0 0
    %232 = vmatprep.subr.bf16.mxu0 0
    %233 = vmatpush1.bf16.msra.mxu0 0
    %234 = vmatprep.subr.bf16.mxu0 0
    %235 = vmatpush1.bf16.msra.mxu0 0
    %236 = vmatprep.subr.bf16.mxu0 0
    %237 = vmatpush1.bf16.msra.mxu0 0
    %238 = vmatprep.mubr.bf16.mxu0 0
    %239 = vmatmul.mubr.bf16.gmra.mrb[0].mxu0 %v183
    %v240 = vpop.f32.mrb[0].mxu0
    %v241 = vadd.f32 0.0, %v240
    %v242 = vpop.f32.mrb[0].mxu0
    %v243 = vpop.f32.mrb[0].mxu0
    %v244 = vadd.f32 0.0, %v243
    %v245 = vpop.f32.mrb[0].mxu0
    %246 = vmatprep.mubr.bf16.mxu0 0
    %247 = vmatmul.mubr.bf16.gmra.mrb[0].mxu0 %v186
    %v248 = vpop.f32.mrb[0].mxu0
    %v249 = vadd.f32 0.0, %v248
    %v250 = vpop.f32.mrb[0].mxu0
    %v251 = vpop.f32.mrb[0].mxu0
    %v252 = vadd.f32 0.0, %v251
    %v253 = vpop.f32.mrb[0].mxu0
    %254 = vmatprep.mubr.bf16.mxu0 0
    %255 = vmatmul.mubr.bf16.gmra.mrb[0].mxu0 %v189
    %v256 = vpop.f32.mrb[0].mxu0
    %v257 = vadd.f32 0.0, %v256
    %v258 = vpop.f32.mrb[0].mxu0
    %v259 = vpop.f32.mrb[0].mxu0
    %v260 = vadd.f32 0.0, %v259
    %v261 = vpop.f32.mrb[0].mxu0
    %262 = vmatprep.mubr.bf16.mxu0 0
    %263 = vmatmul.mubr.bf16.gmra.mrb[0].mxu0 %v192
    %v264 = vpop.f32.mrb[0].mxu0
    %v265 = vadd.f32 0.0, %v264
    %v266 = vpop.f32.mrb[0].mxu0
    %v267 = vpop.f32.mrb[0].mxu0
    %v268 = vadd.f32 0.0, %v267
    %v269 = vpop.f32.mrb[0].mxu0
    %270 = vmatprep.mubr.bf16.mxu0 0
    %271 = vmatmul.mubr.bf16.gmra.mrb[0].mxu0 %v195
    %v272 = vpop.f32.mrb[0].mxu0
    %v273 = vadd.f32 0.0, %v272
    %v274 = vpop.f32.mrb[0].mxu0
    %v275 = vpop.f32.mrb[0].mxu0
    %v276 = vadd.f32 0.0, %v275
    %v277 = vpop.f32.mrb[0].mxu0
    %278 = vmatprep.mubr.bf16.mxu0 0
    %279 = vmatmul.mubr.bf16.gmra.mrb[0].mxu0 %v198
    %v280 = vpop.f32.mrb[0].mxu0
    %v281 = vadd.f32 0.0, %v280
    %v282 = vpop.f32.mrb[0].mxu0
    %v283 = vpop.f32.mrb[0].mxu0
    %v284 = vadd.f32 0.0, %v283
    %v285 = vpop.f32.mrb[0].mxu0
    %286 = vmatprep.mubr.bf16.mxu0 0
    %287 = vmatmul.mubr.bf16.gmra.mrb[0].mxu0 %v201
    %v288 = vpop.f32.mrb[0].mxu0
    %v289 = vadd.f32 0.0, %v288
    %v290 = vpop.f32.mrb[0].mxu0
    %v291 = vpop.f32.mrb[0].mxu0
    %v292 = vadd.f32 0.0, %v291
    %v293 = vpop.f32.mrb[0].mxu0
    %294 = vmatprep.mubr.bf16.mxu0 0
    %295 = vmatmul.mubr.bf16.gmra.mrb[0].mxu0 %v204
    %v296 = vpop.f32.mrb[0].mxu0
    %v297 = vadd.f32 0.0, %v296
    %v298 = vpop.f32.mrb[0].mxu0
    %v299 = vpop.f32.mrb[0].mxu0
    %v300 = vadd.f32 0.0, %v299
    %v301 = vpop.f32.mrb[0].mxu0
    %302 = vdwg.mxu0
    %v303 = vpack.c.bf16 %v244, %v241
    %v304 = vpack.c.bf16 %v252, %v249
    %v305 = vpack.c.bf16 %v260, %v257
    %v306 = vpack.c.bf16 %v268, %v265
    %v307 = vpack.c.bf16 %v276, %v273
    %v308 = vpack.c.bf16 %v284, %v281
    %v309 = vpack.c.bf16 %v292, %v289
    %v310 = vpack.c.bf16 %v300, %v297
    %v327 = vunpack.c.l.b16 %v101
    %v328 = vunpack.c.l.b16 %v102
    %v329 = vunpack.c.l.b16 %v103
    %v330 = vunpack.c.l.b16 %v104
    %v331 = vunpack.c.l.b16 %v105
    %v332 = vunpack.c.l.b16 %v106
    %v333 = vunpack.c.l.b16 %v107
    %v334 = vunpack.c.l.b16 %v108
    %v335 = vunpack.c.l.b16 %v109
    %v336 = vunpack.c.l.b16 %v110
    %v337 = vunpack.c.l.b16 %v111
    %v338 = vunpack.c.l.b16 %v112
    %v339 = vunpack.c.l.b16 %v113
    %v340 = vunpack.c.l.b16 %v114
    %v341 = vunpack.c.l.b16 %v115
    %v342 = vunpack.c.l.b16 %v116
    %v343 = vpack.c.b16 %v328, %v327
    %v344 = vpack.c.b16 %v330, %v329
    %v345 = vpack.c.b16 %v332, %v331
    %v346 = vpack.c.b16 %v334, %v333
    %v347 = vpack.c.b16 %v336, %v335
    %v348 = vpack.c.b16 %v338, %v337
    %v349 = vpack.c.b16 %v340, %v339
    %v350 = vpack.c.b16 %v342, %v341
    %375 = vrot.lane.b32.xlu0 %v241, 120
    %v376 = vpop.permute.xlu0 %375
    %377 = vrot.lane.b32.xlu0 %v244, 120
    %v378 = vpop.permute.xlu0 %377
    %379 = vrot.lane.b32.xlu0 %v249, 120
    %v380 = vpop.permute.xlu0 %379
    %381 = vrot.lane.b32.xlu0 %v252, 120
    %v382 = vpop.permute.xlu0 %381
    %383 = vrot.lane.b32.xlu0 %v257, 120
    %v384 = vpop.permute.xlu0 %383
    %385 = vrot.lane.b32.xlu0 %v260, 120
    %v386 = vpop.permute.xlu0 %385
    %387 = vrot.lane.b32.xlu0 %v265, 120
    %v388 = vpop.permute.xlu0 %387
    %389 = vrot.lane.b32.xlu0 %v268, 120
    %v390 = vpop.permute.xlu0 %389
    %391 = vrot.lane.b32.xlu0 %v273, 120
    %v392 = vpop.permute.xlu0 %391
    %393 = vrot.lane.b32.xlu0 %v276, 120
    %v394 = vpop.permute.xlu0 %393
    %395 = vrot.lane.b32.xlu0 %v281, 120
    %v396 = vpop.permute.xlu0 %395
    %397 = vrot.lane.b32.xlu0 %v284, 120
    %v398 = vpop.permute.xlu0 %397
    %399 = vrot.lane.b32.xlu0 %v289, 120
    %v400 = vpop.permute.xlu0 %399
    %401 = vrot.lane.b32.xlu0 %v292, 120
    %v402 = vpop.permute.xlu0 %401
    %403 = vrot.lane.b32.xlu0 %v297, 120
    %v404 = vpop.permute.xlu0 %403
    %405 = vrot.lane.b32.xlu0 %v300, 120
    %v406 = vpop.permute.xlu0 %405
    %423 = vmatprep.subr.bf16.mxu0 0
    %424 = vmatpush1.bf16.msra.mxu0 %v303
    %425 = vmatprep.subr.bf16.mxu0 0
    %426 = vmatpush1.bf16.msra.mxu0 %v304
    %427 = vmatprep.subr.bf16.mxu0 0
    %428 = vmatpush1.bf16.msra.mxu0 %v305
    %429 = vmatprep.subr.bf16.mxu0 0
    %430 = vmatpush1.bf16.msra.mxu0 %v306
    %431 = vmatprep.subr.bf16.mxu0 0
    %432 = vmatpush1.bf16.msra.mxu0 %v307
    %433 = vmatprep.subr.bf16.mxu0 0
    %434 = vmatpush1.bf16.msra.mxu0 %v308
    %435 = vmatprep.subr.bf16.mxu0 0
    %436 = vmatpush1.bf16.msra.mxu0 %v309
    %437 = vmatprep.subr.bf16.mxu0 0
    %438 = vmatpush1.bf16.msra.mxu0 %v310
    %439 = vmatprep.subr.bf16.mxu0 0
    %440 = vmatpush1.bf16.msra.mxu0 0
    %441 = vmatprep.subr.bf16.mxu0 0
    %442 = vmatpush1.bf16.msra.mxu0 0
    %443 = vmatprep.subr.bf16.mxu0 0
    %444 = vmatpush1.bf16.msra.mxu0 0
    %445 = vmatprep.subr.bf16.mxu0 0
    %446 = vmatpush1.bf16.msra.mxu0 0
    %447 = vmatprep.subr.bf16.mxu0 0
    %448 = vmatpush1.bf16.msra.mxu0 0
    %449 = vmatprep.subr.bf16.mxu0 0
    %450 = vmatpush1.bf16.msra.mxu0 0
    %451 = vmatprep.subr.bf16.mxu0 0
    %452 = vmatpush1.bf16.msra.mxu0 0
    %453 = vmatprep.subr.bf16.mxu0 0
    %454 = vmatpush1.bf16.msra.mxu0 0
    %455 = vmatprep.mubr.bf16.mxu0 0
    %456 = vmatmul.mubr.bf16.gmra.mrb[0].mxu0 %v343
    %v457 = vpop.f32.mrb[0].mxu0
    %v458 = vadd.f32 %v376, %v457
    %v459 = vpop.f32.mrb[0].mxu0
    %v460 = vpop.f32.mrb[0].mxu0
    %v461 = vadd.f32 %v378, %v460
    %v462 = vpop.f32.mrb[0].mxu0
    %463 = vmatprep.mubr.bf16.mxu0 0
    %464 = vmatmul.mubr.bf16.gmra.mrb[0].mxu0 %v344
    %v465 = vpop.f32.mrb[0].mxu0
    %v466 = vadd.f32 %v380, %v465
    %v467 = vpop.f32.mrb[0].mxu0
    %v468 = vpop.f32.mrb[0].mxu0
    %v469 = vadd.f32 %v382, %v468
    %v470 = vpop.f32.mrb[0].mxu0
    %471 = vmatprep.mubr.bf16.mxu0 0
    %472 = vmatmul.mubr.bf16.gmra.mrb[0].mxu0 %v345
    %v473 = vpop.f32.mrb[0].mxu0
    %v474 = vadd.f32 %v384, %v473
    %v475 = vpop.f32.mrb[0].mxu0
    %v476 = vpop.f32.mrb[0].mxu0
    %v477 = vadd.f32 %v386, %v476
    %v478 = vpop.f32.mrb[0].mxu0
    %479 = vmatprep.mubr.bf16.mxu0 0
    %480 = vmatmul.mubr.bf16.gmra.mrb[0].mxu0 %v346
    %v481 = vpop.f32.mrb[0].mxu0
    %v482 = vadd.f32 %v388, %v481
    %v483 = vpop.f32.mrb[0].mxu0
    %v484 = vpop.f32.mrb[0].mxu0
    %v485 = vadd.f32 %v390, %v484
    %v486 = vpop.f32.mrb[0].mxu0
    %487 = vmatprep.mubr.bf16.mxu0 0
    %488 = vmatmul.mubr.bf16.gmra.mrb[0].mxu0 %v347
    %v489 = vpop.f32.mrb[0].mxu0
    %v490 = vadd.f32 %v392, %v489
    %v491 = vpop.f32.mrb[0].mxu0
    %v492 = vpop.f32.mrb[0].mxu0
    %v493 = vadd.f32 %v394, %v492
    %v494 = vpop.f32.mrb[0].mxu0
    %495 = vmatprep.mubr.bf16.mxu0 0
    %496 = vmatmul.mubr.bf16.gmra.mrb[0].mxu0 %v348
    %v497 = vpop.f32.mrb[0].mxu0
    %v498 = vadd.f32 %v396, %v497
    %v499 = vpop.f32.mrb[0].mxu0
    %v500 = vpop.f32.mrb[0].mxu0
    %v501 = vadd.f32 %v398, %v500
    %v502 = vpop.f32.mrb[0].mxu0
    %503 = vmatprep.mubr.bf16.mxu0 0
    %504 = vmatmul.mubr.bf16.gmra.mrb[0].mxu0 %v349
    %v505 = vpop.f32.mrb[0].mxu0
    %v506 = vadd.f32 %v400, %v505
    %v507 = vpop.f32.mrb[0].mxu0
    %v508 = vpop.f32.mrb[0].mxu0
    %v509 = vadd.f32 %v402, %v508
    %v510 = vpop.f32.mrb[0].mxu0
    %511 = vmatprep.mubr.bf16.mxu0 0
    %512 = vmatmul.mubr.bf16.gmra.mrb[0].mxu0 %v350
    %v513 = vpop.f32.mrb[0].mxu0
    %v514 = vadd.f32 %v404, %v513
    %v515 = vpop.f32.mrb[0].mxu0
    %v516 = vpop.f32.mrb[0].mxu0
    %v517 = vadd.f32 %v406, %v516
    %v518 = vpop.f32.mrb[0].mxu0
    %519 = vdwg.mxu0
    %v520 = vld [vmem:[#allocation8] sm:$0x1]
    %v522 = vlaneseq
    %v523 = vshrl.u32 %v522, 7
    %v524 = vsub.s32 0, %v523
    %v525 = vrot.slane %v520, %v524
    %v527 = vadd.f32 %v458, %v525
    %v528 = vadd.f32 %v461, %v525
    %v529 = vadd.f32 %v466, %v525
    %v530 = vadd.f32 %v469, %v525
    %v531 = vadd.f32 %v474, %v525
    %v532 = vadd.f32 %v477, %v525
    %v533 = vadd.f32 %v482, %v525
    %v534 = vadd.f32 %v485, %v525
    %v535 = vadd.f32 %v490, %v525
    %v536 = vadd.f32 %v493, %v525
    %v537 = vadd.f32 %v498, %v525
    %v538 = vadd.f32 %v501, %v525
    %v539 = vadd.f32 %v506, %v525
    %v540 = vadd.f32 %v509, %v525
    %v541 = vadd.f32 %v514, %v525
    %v542 = vadd.f32 %v517, %v525
    %v543 = vmax.f32 %v527, 0.0
    %v544 = vmax.f32 %v528, 0.0
    %v545 = vmax.f32 %v529, 0.0
    %v546 = vmax.f32 %v530, 0.0
    %v547 = vmax.f32 %v531, 0.0
    %v548 = vmax.f32 %v532, 0.0
    %v549 = vmax.f32 %v533, 0.0
    %v550 = vmax.f32 %v534, 0.0
    %v551 = vmax.f32 %v535, 0.0
    %v552 = vmax.f32 %v536, 0.0
    %v553 = vmax.f32 %v537, 0.0
    %v554 = vmax.f32 %v538, 0.0
    %v555 = vmax.f32 %v539, 0.0
    %v556 = vmax.f32 %v540, 0.0
    %v557 = vmax.f32 %v541, 0.0
    %v558 = vmax.f32 %v542, 0.0
    %v559 = vpack.c.bf16 %v544, %v543
    %v560 = vpack.c.bf16 %v546, %v545
    %v561 = vpack.c.bf16 %v548, %v547
    %v562 = vpack.c.bf16 %v550, %v549
    %v563 = vpack.c.bf16 %v552, %v551
    %v564 = vpack.c.bf16 %v554, %v553
    %v565 = vpack.c.bf16 %v556, %v555
    %v566 = vpack.c.bf16 %v558, %v557
    %v567 = vld [vmem:[#allocation10] sm:$0xf]
    %vm568 = vcmask 64512
    %v570 = vsel %vm568, %v559, 0
    %v573 = vsel %vm568, %v560, 0
    %v576 = vsel %vm568, %v561, 0
    %v579 = vsel %vm568, %v562, 0
    %v582 = vsel %vm568, %v563, 0
    %v585 = vsel %vm568, %v564, 0
    %v588 = vsel %vm568, %v565, 0
    %v591 = vsel %vm568, %v566, 0
    %vm593 = vcmask 1043456
    %v595 = vsel %vm593, %v567, 0
    %597 = vmatprep.subr.bf16.mxu0 0
    %598 = vmatpush1.bf16.msra.mxu0 %v595
    %599 = vmatprep.subr.bf16.mxu0 0
    %600 = vmatpush1.bf16.msra.mxu0 0
    %601 = vmatprep.subr.bf16.mxu0 0
    %602 = vmatpush1.bf16.msra.mxu0 0
    %603 = vmatprep.subr.bf16.mxu0 0
    %604 = vmatpush1.bf16.msra.mxu0 0
    %605 = vmatprep.subr.bf16.mxu0 0
    %606 = vmatpush1.bf16.msra.mxu0 0
    %607 = vmatprep.subr.bf16.mxu0 0
    %608 = vmatpush1.bf16.msra.mxu0 0
    %609 = vmatprep.subr.bf16.mxu0 0
    %610 = vmatpush1.bf16.msra.mxu0 0
    %611 = vmatprep.subr.bf16.mxu0 0
    %612 = vmatpush1.bf16.msra.mxu0 0
    %613 = vmatprep.subr.bf16.mxu0 0
    %614 = vmatpush1.bf16.msra.mxu0 0
    %615 = vmatprep.subr.bf16.mxu0 0
    %616 = vmatpush1.bf16.msra.mxu0 0
    %617 = vmatprep.subr.bf16.mxu0 0
    %618 = vmatpush1.bf16.msra.mxu0 0
    %619 = vmatprep.subr.bf16.mxu0 0
    %620 = vmatpush1.bf16.msra.mxu0 0
    %621 = vmatprep.subr.bf16.mxu0 0
    %622 = vmatpush1.bf16.msra.mxu0 0
    %623 = vmatprep.subr.bf16.mxu0 0
    %624 = vmatpush1.bf16.msra.mxu0 0
    %625 = vmatprep.subr.bf16.mxu0 0
    %626 = vmatpush1.bf16.msra.mxu0 0
    %627 = vmatprep.subr.bf16.mxu0 0
    %628 = vmatpush1.bf16.msra.mxu0 0
    %629 = vmatprep.mubr.bf16.mxu0 0
    %630 = vmatmul.mubr.bf16.gmra.mrb[0].mxu0 %v570
    %v631 = vpop.f32.mrb[0].mxu0
    %v632 = vadd.f32 0.0, %v631
    %v633 = vpop.f32.mrb[0].mxu0
    %v634 = vpop.f32.mrb[0].mxu0
    %v635 = vadd.f32 0.0, %v634
    %v636 = vpop.f32.mrb[0].mxu0
    %637 = vmatprep.mubr.bf16.mxu0 0
    %638 = vmatmul.mubr.bf16.gmra.mrb[0].mxu0 %v573
    %v639 = vpop.f32.mrb[0].mxu0
    %v640 = vadd.f32 0.0, %v639
    %v641 = vpop.f32.mrb[0].mxu0
    %v642 = vpop.f32.mrb[0].mxu0
    %v643 = vadd.f32 0.0, %v642
    %v644 = vpop.f32.mrb[0].mxu0
    %645 = vmatprep.mubr.bf16.mxu0 0
    %646 = vmatmul.mubr.bf16.gmra.mrb[0].mxu0 %v576
    %v647 = vpop.f32.mrb[0].mxu0
    %v648 = vadd.f32 0.0, %v647
    %v649 = vpop.f32.mrb[0].mxu0
    %v650 = vpop.f32.mrb[0].mxu0
    %v651 = vadd.f32 0.0, %v650
    %v652 = vpop.f32.mrb[0].mxu0
    %653 = vmatprep.mubr.bf16.mxu0 0
    %654 = vmatmul.mubr.bf16.gmra.mrb[0].mxu0 %v579
    %v655 = vpop.f32.mrb[0].mxu0
    %v656 = vadd.f32 0.0, %v655
    %v657 = vpop.f32.mrb[0].mxu0
    %v658 = vpop.f32.mrb[0].mxu0
    %v659 = vadd.f32 0.0, %v658
    %v660 = vpop.f32.mrb[0].mxu0
    %661 = vmatprep.mubr.bf16.mxu0 0
    %662 = vmatmul.mubr.bf16.gmra.mrb[0].mxu0 %v582
    %v663 = vpop.f32.mrb[0].mxu0
    %v664 = vadd.f32 0.0, %v663
    %v665 = vpop.f32.mrb[0].mxu0
    %v666 = vpop.f32.mrb[0].mxu0
    %v667 = vadd.f32 0.0, %v666
    %v668 = vpop.f32.mrb[0].mxu0
    %669 = vmatprep.mubr.bf16.mxu0 0
    %670 = vmatmul.mubr.bf16.gmra.mrb[0].mxu0 %v585
    %v671 = vpop.f32.mrb[0].mxu0
    %v672 = vadd.f32 0.0, %v671
    %v673 = vpop.f32.mrb[0].mxu0
    %v674 = vpop.f32.mrb[0].mxu0
    %v675 = vadd.f32 0.0, %v674
    %v676 = vpop.f32.mrb[0].mxu0
    %677 = vmatprep.mubr.bf16.mxu0 0
    %678 = vmatmul.mubr.bf16.gmra.mrb[0].mxu0 %v588
    %v679 = vpop.f32.mrb[0].mxu0
    %v680 = vadd.f32 0.0, %v679
    %v681 = vpop.f32.mrb[0].mxu0
    %v682 = vpop.f32.mrb[0].mxu0
    %v683 = vadd.f32 0.0, %v682
    %v684 = vpop.f32.mrb[0].mxu0
    %685 = vmatprep.mubr.bf16.mxu0 0
    %686 = vmatmul.mubr.bf16.gmra.mrb[0].mxu0 %v591
    %v687 = vpop.f32.mrb[0].mxu0
    %v688 = vadd.f32 0.0, %v687
    %v689 = vpop.f32.mrb[0].mxu0
    %v690 = vpop.f32.mrb[0].mxu0
    %v691 = vadd.f32 0.0, %v690
    %v692 = vpop.f32.mrb[0].mxu0
    %693 = vdwg.mxu0
    %v694 = vpack.c.bf16 %v635, %v632
    %v695 = vpack.c.bf16 %v643, %v640
    %v696 = vpack.c.bf16 %v651, %v648
    %v697 = vpack.c.bf16 %v659, %v656
    %v698 = vpack.c.bf16 %v667, %v664
    %v699 = vpack.c.bf16 %v675, %v672
    %v700 = vpack.c.bf16 %v683, %v680
    %v701 = vpack.c.bf16 %v691, %v688
    %718 = vrot.lane.b32.xlu0 %v632, 124
    %v719 = vpop.permute.xlu0 %718
    %720 = vrot.lane.b32.xlu0 %v635, 124
    %v721 = vpop.permute.xlu0 %720
    %722 = vrot.lane.b32.xlu0 %v640, 124
    %v723 = vpop.permute.xlu0 %722
    %724 = vrot.lane.b32.xlu0 %v643, 124
    %v725 = vpop.permute.xlu0 %724
    %726 = vrot.lane.b32.xlu0 %v648, 124
    %v727 = vpop.permute.xlu0 %726
    %728 = vrot.lane.b32.xlu0 %v651, 124
    %v729 = vpop.permute.xlu0 %728
    %730 = vrot.lane.b32.xlu0 %v656, 124
    %v731 = vpop.permute.xlu0 %730
    %732 = vrot.lane.b32.xlu0 %v659, 124
    %v733 = vpop.permute.xlu0 %732
    %734 = vrot.lane.b32.xlu0 %v664, 124
    %v735 = vpop.permute.xlu0 %734
    %736 = vrot.lane.b32.xlu0 %v667, 124
    %v737 = vpop.permute.xlu0 %736
    %738 = vrot.lane.b32.xlu0 %v672, 124
    %v739 = vpop.permute.xlu0 %738
    %740 = vrot.lane.b32.xlu0 %v675, 124
    %v741 = vpop.permute.xlu0 %740
    %742 = vrot.lane.b32.xlu0 %v680, 124
    %v743 = vpop.permute.xlu0 %742
    %744 = vrot.lane.b32.xlu0 %v683, 124
    %v745 = vpop.permute.xlu0 %744
    %746 = vrot.lane.b32.xlu0 %v688, 124
    %v747 = vpop.permute.xlu0 %746
    %748 = vrot.lane.b32.xlu0 %v691, 124
    %v749 = vpop.permute.xlu0 %748
    %766 = vmatprep.subr.bf16.mxu0 0
    %767 = vmatpush1.bf16.msra.mxu0 %v694
    %768 = vmatprep.subr.bf16.mxu0 0
    %769 = vmatpush1.bf16.msra.mxu0 %v695
    %770 = vmatprep.subr.bf16.mxu0 0
    %771 = vmatpush1.bf16.msra.mxu0 %v696
    %772 = vmatprep.subr.bf16.mxu0 0
    %773 = vmatpush1.bf16.msra.mxu0 %v697
    %774 = vmatprep.subr.bf16.mxu0 0
    %775 = vmatpush1.bf16.msra.mxu0 %v698
    %776 = vmatprep.subr.bf16.mxu0 0
    %777 = vmatpush1.bf16.msra.mxu0 %v699
    %778 = vmatprep.subr.bf16.mxu0 0
    %779 = vmatpush1.bf16.msra.mxu0 %v700
    %780 = vmatprep.subr.bf16.mxu0 0
    %781 = vmatpush1.bf16.msra.mxu0 %v701
    %782 = vmatprep.subr.bf16.mxu0 0
    %783 = vmatpush1.bf16.msra.mxu0 0
    %784 = vmatprep.subr.bf16.mxu0 0
    %785 = vmatpush1.bf16.msra.mxu0 0
    %786 = vmatprep.subr.bf16.mxu0 0
    %787 = vmatpush1.bf16.msra.mxu0 0
    %788 = vmatprep.subr.bf16.mxu0 0
    %789 = vmatpush1.bf16.msra.mxu0 0
    %790 = vmatprep.subr.bf16.mxu0 0
    %791 = vmatpush1.bf16.msra.mxu0 0
    %792 = vmatprep.subr.bf16.mxu0 0
    %793 = vmatpush1.bf16.msra.mxu0 0
    %794 = vmatprep.subr.bf16.mxu0 0
    %795 = vmatpush1.bf16.msra.mxu0 0
    %796 = vmatprep.subr.bf16.mxu0 0
    %797 = vmatpush1.bf16.msra.mxu0 0
    %798 = vmatprep.mubr.bf16.mxu0 0
    %799 = vmatmul.mubr.bf16.gmra.mrb[0].mxu0 %v343
    %v800 = vpop.f32.mrb[0].mxu0
    %v801 = vadd.f32 %v719, %v800
    %v802 = vpop.f32.mrb[0].mxu0
    %v803 = vpop.f32.mrb[0].mxu0
    %v804 = vadd.f32 %v721, %v803
    %v805 = vpop.f32.mrb[0].mxu0
    %806 = vmatprep.mubr.bf16.mxu0 0
    %807 = vmatmul.mubr.bf16.gmra.mrb[0].mxu0 %v344
    %v808 = vpop.f32.mrb[0].mxu0
    %v809 = vadd.f32 %v723, %v808
    %v810 = vpop.f32.mrb[0].mxu0
    %v811 = vpop.f32.mrb[0].mxu0
    %v812 = vadd.f32 %v725, %v811
    %v813 = vpop.f32.mrb[0].mxu0
    %814 = vmatprep.mubr.bf16.mxu0 0
    %815 = vmatmul.mubr.bf16.gmra.mrb[0].mxu0 %v345
    %v816 = vpop.f32.mrb[0].mxu0
    %v817 = vadd.f32 %v727, %v816
    %v818 = vpop.f32.mrb[0].mxu0
    %v819 = vpop.f32.mrb[0].mxu0
    %v820 = vadd.f32 %v729, %v819
    %v821 = vpop.f32.mrb[0].mxu0
    %822 = vmatprep.mubr.bf16.mxu0 0
    %823 = vmatmul.mubr.bf16.gmra.mrb[0].mxu0 %v346
    %v824 = vpop.f32.mrb[0].mxu0
    %v825 = vadd.f32 %v731, %v824
    %v826 = vpop.f32.mrb[0].mxu0
    %v827 = vpop.f32.mrb[0].mxu0
    %v828 = vadd.f32 %v733, %v827
    %v829 = vpop.f32.mrb[0].mxu0
    %830 = vmatprep.mubr.bf16.mxu0 0
    %831 = vmatmul.mubr.bf16.gmra.mrb[0].mxu0 %v347
    %v832 = vpop.f32.mrb[0].mxu0
    %v833 = vadd.f32 %v735, %v832
    %v834 = vpop.f32.mrb[0].mxu0
    %v835 = vpop.f32.mrb[0].mxu0
    %v836 = vadd.f32 %v737, %v835
    %v837 = vpop.f32.mrb[0].mxu0
    %838 = vmatprep.mubr.bf16.mxu0 0
    %839 = vmatmul.mubr.bf16.gmra.mrb[0].mxu0 %v348
    %v840 = vpop.f32.mrb[0].mxu0
    %v841 = vadd.f32 %v739, %v840
    %v842 = vpop.f32.mrb[0].mxu0
    %v843 = vpop.f32.mrb[0].mxu0
    %v844 = vadd.f32 %v741, %v843
    %v845 = vpop.f32.mrb[0].mxu0
    %846 = vmatprep.mubr.bf16.mxu0 0
    %847 = vmatmul.mubr.bf16.gmra.mrb[0].mxu0 %v349
    %v848 = vpop.f32.mrb[0].mxu0
    %v849 = vadd.f32 %v743, %v848
    %v850 = vpop.f32.mrb[0].mxu0
    %v851 = vpop.f32.mrb[0].mxu0
    %v852 = vadd.f32 %v745, %v851
    %v853 = vpop.f32.mrb[0].mxu0
    %854 = vmatprep.mubr.bf16.mxu0 0
    %855 = vmatmul.mubr.bf16.gmra.mrb[0].mxu0 %v350
    %v856 = vpop.f32.mrb[0].mxu0
    %v857 = vadd.f32 %v747, %v856
    %v858 = vpop.f32.mrb[0].mxu0
    %v859 = vpop.f32.mrb[0].mxu0
    %v860 = vadd.f32 %v749, %v859
    %v861 = vpop.f32.mrb[0].mxu0
    %862 = vdwg.mxu0
    %v863 = vld [vmem:[#allocation11] sm:$0x1]
    %v865 = vlaneseq
    %v866 = vshrl.u32 %v865, 7
    %v867 = vsub.s32 0, %v866
    %v868 = vrot.slane %v863, %v867
    %v870 = vadd.f32 %v801, %v868
    %v871 = vadd.f32 %v804, %v868
    %v872 = vadd.f32 %v809, %v868
    %v873 = vadd.f32 %v812, %v868
    %v874 = vadd.f32 %v817, %v868
    %v875 = vadd.f32 %v820, %v868
    %v876 = vadd.f32 %v825, %v868
    %v877 = vadd.f32 %v828, %v868
    %v878 = vadd.f32 %v833, %v868
    %v879 = vadd.f32 %v836, %v868
    %v880 = vadd.f32 %v841, %v868
    %v881 = vadd.f32 %v844, %v868
    %v882 = vadd.f32 %v849, %v868
    %v883 = vadd.f32 %v852, %v868
    %v884 = vadd.f32 %v857, %v868
    %v885 = vadd.f32 %v860, %v868
    %vm886 = vcmask 31744
    %v887 = vsel %vm886, %v870, -inf
    %888 = vmax.xlane.f32.xlu0 %v887
    %v889 = vpop.xlane.xlu0 %888
    %v890 = vsel %vm886, %v871, -inf
    %891 = vmax.xlane.f32.xlu0 %v890
    %v892 = vpop.xlane.xlu0 %891
    %v893 = vsel %vm886, %v872, -inf
    %894 = vmax.xlane.f32.xlu0 %v893
    %v895 = vpop.xlane.xlu0 %894
    %v896 = vsel %vm886, %v873, -inf
    %897 = vmax.xlane.f32.xlu0 %v896
    %v898 = vpop.xlane.xlu0 %897
    %v899 = vsel %vm886, %v874, -inf
    %900 = vmax.xlane.f32.xlu0 %v899
    %v901 = vpop.xlane.xlu0 %900
    %v902 = vsel %vm886, %v875, -inf
    %903 = vmax.xlane.f32.xlu0 %v902
    %v904 = vpop.xlane.xlu0 %903
    %v905 = vsel %vm886, %v876, -inf
    %906 = vmax.xlane.f32.xlu0 %v905
    %v907 = vpop.xlane.xlu0 %906
    %v908 = vsel %vm886, %v877, -inf
    %909 = vmax.xlane.f32.xlu0 %v908
    %v910 = vpop.xlane.xlu0 %909
    %v911 = vsel %vm886, %v878, -inf
    %912 = vmax.xlane.f32.xlu0 %v911
    %v913 = vpop.xlane.xlu0 %912
    %v914 = vsel %vm886, %v879, -inf
    %915 = vmax.xlane.f32.xlu0 %v914
    %v916 = vpop.xlane.xlu0 %915
    %v917 = vsel %vm886, %v880, -inf
    %918 = vmax.xlane.f32.xlu0 %v917
    %v919 = vpop.xlane.xlu0 %918
    %v920 = vsel %vm886, %v881, -inf
    %921 = vmax.xlane.f32.xlu0 %v920
    %v922 = vpop.xlane.xlu0 %921
    %v923 = vsel %vm886, %v882, -inf
    %924 = vmax.xlane.f32.xlu0 %v923
    %v925 = vpop.xlane.xlu0 %924
    %v926 = vsel %vm886, %v883, -inf
    %927 = vmax.xlane.f32.xlu0 %v926
    %v928 = vpop.xlane.xlu0 %927
    %v929 = vsel %vm886, %v884, -inf
    %930 = vmax.xlane.f32.xlu0 %v929
    %v931 = vpop.xlane.xlu0 %930
    %v932 = vsel %vm886, %v885, -inf
    %933 = vmax.xlane.f32.xlu0 %v932
    %v934 = vpop.xlane.xlu0 %933
    %v935 = vsub.f32 %v870, %v889
    %v936 = vsub.f32 %v871, %v892
    %v937 = vsub.f32 %v872, %v895
    %v938 = vsub.f32 %v873, %v898
    %v939 = vsub.f32 %v874, %v901
    %v940 = vsub.f32 %v875, %v904
    %v941 = vsub.f32 %v876, %v907
    %v942 = vsub.f32 %v877, %v910
    %v943 = vsub.f32 %v878, %v913
    %v944 = vsub.f32 %v879, %v916
    %v945 = vsub.f32 %v880, %v919
    %v946 = vsub.f32 %v881, %v922
    %v947 = vsub.f32 %v882, %v925
    %v948 = vsub.f32 %v883, %v928
    %v949 = vsub.f32 %v884, %v931
    %v950 = vsub.f32 %v885, %v934
    %v951 = vmul.f32 %v935, 1.442695
    %v952 = vpow.pop %v951
    %v953 = vmul.f32 %v936, 1.442695
    %v954 = vpow.pop %v953
    %v955 = vmul.f32 %v937, 1.442695
    %v956 = vpow.pop %v955
    %v957 = vmul.f32 %v938, 1.442695
    %v958 = vpow.pop %v957
    %v959 = vmul.f32 %v939, 1.442695
    %v960 = vpow.pop %v959
    %v961 = vmul.f32 %v940, 1.442695
    %v962 = vpow.pop %v961
    %v963 = vmul.f32 %v941, 1.442695
    %v964 = vpow.pop %v963
    %v965 = vmul.f32 %v942, 1.442695
    %v966 = vpow.pop %v965
    %v967 = vmul.f32 %v943, 1.442695
    %v968 = vpow.pop %v967
    %v969 = vmul.f32 %v944, 1.442695
    %v970 = vpow.pop %v969
    %v971 = vmul.f32 %v945, 1.442695
    %v972 = vpow.pop %v971
    %v973 = vmul.f32 %v946, 1.442695
    %v974 = vpow.pop %v973
    %v975 = vmul.f32 %v947, 1.442695
    %v976 = vpow.pop %v975
    %v977 = vmul.f32 %v948, 1.442695
    %v978 = vpow.pop %v977
    %v979 = vmul.f32 %v949, 1.442695
    %v980 = vpow.pop %v979
    %v981 = vmul.f32 %v950, 1.442695
    %v982 = vpow.pop %v981
    %v983 = vsel %vm886, %v952, 0.0
    %984 = vadd.xlane.f32.xlu0 %v983
    %v985 = vpop.xlane.xlu0 %984
    %v986 = vsel %vm886, %v954, 0.0
    %987 = vadd.xlane.f32.xlu0 %v986
    %v988 = vpop.xlane.xlu0 %987
    %v989 = vsel %vm886, %v956, 0.0
    %990 = vadd.xlane.f32.xlu0 %v989
    %v991 = vpop.xlane.xlu0 %990
    %v992 = vsel %vm886, %v958, 0.0
    %993 = vadd.xlane.f32.xlu0 %v992
    %v994 = vpop.xlane.xlu0 %993
    %v995 = vsel %vm886, %v960, 0.0
    %996 = vadd.xlane.f32.xlu0 %v995
    %v997 = vpop.xlane.xlu0 %996
    %v998 = vsel %vm886, %v962, 0.0
    %999 = vadd.xlane.f32.xlu0 %v998
    %v1000 = vpop.xlane.xlu0 %999
    %v1001 = vsel %vm886, %v964, 0.0
    %1002 = vadd.xlane.f32.xlu0 %v1001
    %v1003 = vpop.xlane.xlu0 %1002
    %v1004 = vsel %vm886, %v966, 0.0
    %1005 = vadd.xlane.f32.xlu0 %v1004
    %v1006 = vpop.xlane.xlu0 %1005
    %v1007 = vsel %vm886, %v968, 0.0
    %1008 = vadd.xlane.f32.xlu0 %v1007
    %v1009 = vpop.xlane.xlu0 %1008
    %v1010 = vsel %vm886, %v970, 0.0
    %1011 = vadd.xlane.f32.xlu0 %v1010
    %v1012 = vpop.xlane.xlu0 %1011
    %v1013 = vsel %vm886, %v972, 0.0
    %1014 = vadd.xlane.f32.xlu0 %v1013
    %v1015 = vpop.xlane.xlu0 %1014
    %v1016 = vsel %vm886, %v974, 0.0
    %1017 = vadd.xlane.f32.xlu0 %v1016
    %v1018 = vpop.xlane.xlu0 %1017
    %v1019 = vsel %vm886, %v976, 0.0
    %1020 = vadd.xlane.f32.xlu0 %v1019
    %v1021 = vpop.xlane.xlu0 %1020
    %v1022 = vsel %vm886, %v978, 0.0
    %1023 = vadd.xlane.f32.xlu0 %v1022
    %v1024 = vpop.xlane.xlu0 %1023
    %v1025 = vsel %vm886, %v980, 0.0
    %1026 = vadd.xlane.f32.xlu0 %v1025
    %v1027 = vpop.xlane.xlu0 %1026
    %v1028 = vsel %vm886, %v982, 0.0
    %1029 = vadd.xlane.f32.xlu0 %v1028
    %v1030 = vpop.xlane.xlu0 %1029
    %v1031 = vlog2.pop %v985
    %v1032 = vmul.f32 %v1031, 0.6931472
    %v1033 = vlog2.pop %v988
    %v1034 = vmul.f32 %v1033, 0.6931472
    %v1035 = vlog2.pop %v991
    %v1036 = vmul.f32 %v1035, 0.6931472
    %v1037 = vlog2.pop %v994
    %v1038 = vmul.f32 %v1037, 0.6931472
    %v1039 = vlog2.pop %v997
    %v1040 = vmul.f32 %v1039, 0.6931472
    %v1041 = vlog2.pop %v1000
    %v1042 = vmul.f32 %v1041, 0.6931472
    %v1043 = vlog2.pop %v1003
    %v1044 = vmul.f32 %v1043, 0.6931472
    %v1045 = vlog2.pop %v1006
    %v1046 = vmul.f32 %v1045, 0.6931472
    %v1047 = vlog2.pop %v1009
    %v1048 = vmul.f32 %v1047, 0.6931472
    %v1049 = vlog2.pop %v1012
    %v1050 = vmul.f32 %v1049, 0.6931472
    %v1051 = vlog2.pop %v1015
    %v1052 = vmul.f32 %v1051, 0.6931472
    %v1053 = vlog2.pop %v1018
    %v1054 = vmul.f32 %v1053, 0.6931472
    %v1055 = vlog2.pop %v1021
    %v1056 = vmul.f32 %v1055, 0.6931472
    %v1057 = vlog2.pop %v1024
    %v1058 = vmul.f32 %v1057, 0.6931472
    %v1059 = vlog2.pop %v1027
    %v1060 = vmul.f32 %v1059, 0.6931472
    %v1061 = vlog2.pop %v1030
    %v1062 = vmul.f32 %v1061, 0.6931472
    %v1063 = vadd.f32 %v1032, %v889
    %v1064 = vadd.f32 %v1034, %v892
    %v1065 = vadd.f32 %v1036, %v895
    %v1066 = vadd.f32 %v1038, %v898
    %v1067 = vadd.f32 %v1040, %v901
    %v1068 = vadd.f32 %v1042, %v904
    %v1069 = vadd.f32 %v1044, %v907
    %v1070 = vadd.f32 %v1046, %v910
    %v1071 = vadd.f32 %v1048, %v913
    %v1072 = vadd.f32 %v1050, %v916
    %v1073 = vadd.f32 %v1052, %v919
    %v1074 = vadd.f32 %v1054, %v922
    %v1075 = vadd.f32 %v1056, %v925
    %v1076 = vadd.f32 %v1058, %v928
    %v1077 = vadd.f32 %v1060, %v931
    %v1078 = vadd.f32 %v1062, %v934
    %v1079 = vsub.f32 %v870, %v1063
    %v1080 = vsub.f32 %v871, %v1064
    %v1081 = vsub.f32 %v872, %v1065
    %v1082 = vsub.f32 %v873, %v1066
    %v1083 = vsub.f32 %v874, %v1067
    %v1084 = vsub.f32 %v875, %v1068
    %v1085 = vsub.f32 %v876, %v1069
    %v1086 = vsub.f32 %v877, %v1070
    %v1087 = vsub.f32 %v878, %v1071
    %v1088 = vsub.f32 %v879, %v1072
    %v1089 = vsub.f32 %v880, %v1073
    %v1090 = vsub.f32 %v881, %v1074
    %v1091 = vsub.f32 %v882, %v1075
    %v1092 = vsub.f32 %v883, %v1076
    %v1093 = vsub.f32 %v884, %v1077
    %v1094 = vsub.f32 %v885, %v1078
    %1095 = vst.msk [vmem:[#allocation13] sm:$0xff] %vm886, %v1079
    %1096 = vst.msk [vmem:[#allocation13 + $0x8] sm:$0xff] %vm886, %v1080
    %1097 = vst.msk [vmem:[#allocation13 + $0x10] sm:$0xff] %vm886, %v1081
    %1098 = vst.msk [vmem:[#allocation13 + $0x18] sm:$0xff] %vm886, %v1082
    %1099 = vst.msk [vmem:[#allocation13 + $0x20] sm:$0xff] %vm886, %v1083
    %1100 = vst.msk [vmem:[#allocation13 + $0x28] sm:$0xff] %vm886, %v1084
    %1101 = vst.msk [vmem:[#allocation13 + $0x30] sm:$0xff] %vm886, %v1085
    %1102 = vst.msk [vmem:[#allocation13 + $0x38] sm:$0xff] %vm886, %v1086
    %1103 = vst.msk [vmem:[#allocation13 + $0x40] sm:$0xff] %vm886, %v1087
    %1104 = vst.msk [vmem:[#allocation13 + $0x48] sm:$0xff] %vm886, %v1088
    %1105 = vst.msk [vmem:[#allocation13 + $0x50] sm:$0xff] %vm886, %v1089
    %1106 = vst.msk [vmem:[#allocation13 + $0x58] sm:$0xff] %vm886, %v1090
    %1107 = vst.msk [vmem:[#allocation13 + $0x60] sm:$0xff] %vm886, %v1091
    %1108 = vst.msk [vmem:[#allocation13 + $0x68] sm:$0xff] %vm886, %v1092
    %1109 = vst.msk [vmem:[#allocation13 + $0x70] sm:$0xff] %vm886, %v1093
    %1110 = vst.msk [vmem:[#allocation13 + $0x78] sm:$0xff] %vm886, %v1094
    // Predicated region
    $region50: #{tpu_custom_call.1} parent=1 // pred_check
      _
    $region51: #{tpu_custom_call.1} parent=1 // pred_check_branch
      %1112 = sbr.rel (0) target = $region53
    $region52: #{tpu_custom_call.1} parent=1 // pred_region
      %s1114 = ssub.s32 2048, 2048
      %1115 = vsyncadd [#allocation4], %s1114
      %s1116 = sshll.u32 [#allocation13], 4
      %s1117 = int_to_ptr.vmem [resolvable:$true] %s1116
      %1122 = dma.vmem_to_hbm [thread:$0]  %s1117, 2048, %s6, [#allocation4], 128, 128, 8
    $region53: #{tpu_custom_call.1} parent=1 // pred_fallthru
      _
    // Predicated region
    $region54: #{tpu_custom_call.1} parent=1 // pred_check
      _
    $region55: #{tpu_custom_call.1} parent=1 // pred_check_branch
      %1124 = sbr.rel (0) target = $region57
    $region56: #{tpu_custom_call.1} parent=1 // pred_region
      %1125 = dma.done [#allocation4], 2048
    $region57: #{tpu_custom_call.1} parent=1 // pred_fallthru
      _
    %1126 = vsyncpa [#allocation3], 1
    %1127 = vsyncpa [#allocation6], 1
    %1128 = vsyncpa [#allocation9], 1
    %1129 = vsyncpa [#allocation12], 1
    %1130 = vsyncpa [#allocation4], 1

</llo_original>
